<compile_context>
chip_gen: v5e
topology: v5e:2x2
jax: 0.10.0
libtpu: 0.0.40
codegen_flags: <defaults>
</compile_context>

<pallas_src>
import math
import functools

import jax
import jax.numpy as jnp
from jax import lax
from jax.experimental import pallas as pl
from jax.experimental.pallas import tpu as pltpu

EPS = 1e-5            # PyTorch nn.LayerNorm default eps
_MASK_NEG = -1e30     # large finite negative (avoids -inf -> NaN on fully masked rows)


# ---------------------------------------------------------------------------
# In-kernel helpers (pure jnp, traced inside the Pallas kernels)
# ---------------------------------------------------------------------------
def _layernorm(x, w, b):
    mu = jnp.mean(x, axis=-1, keepdims=True)
    var = jnp.mean((x - mu) ** 2, axis=-1, keepdims=True)
    return (x - mu) * lax.rsqrt(var + EPS) * w + b


def _gelu_tanh(x):
    # matches FeedForwardNetworks.gelu (tanh approximation), computed in f32
    return 0.5 * x * (1.0 + jnp.tanh(math.sqrt(2.0 / math.pi) * (x + 0.044715 * x ** 3)))


# ---------------------------------------------------------------------------
# Kernel 1: LN1 + fused QKV projection -> head-major Q/K/V   (grid = (B, T//tq))
# Q is pre-scaled by 1/sqrt(hd) so the attention kernel never scales scores.
# The head-major relayout happens here once, on tq-sized tiles, so the attention
# kernel never reshapes / transposes T-sized K/V operands.
# ---------------------------------------------------------------------------
def _ln_qkv_kernel(n_heads, scale, x_ref, w_ref, b_ref, wqkv_ref, bqkv_ref,
                   q_ref, k_ref, v_ref):
    C = x_ref.shape[2]
    hd = C // n_heads
    x = x_ref[0].astype(jnp.float32)                                   # (tq, C)
    h = _layernorm(x, w_ref[...], b_ref[...])
    y = jnp.dot(h.astype(jnp.bfloat16), wqkv_ref[...],
                preferred_element_type=jnp.float32) + bqkv_ref[...]    # (tq, 3C) f32
    for hh in range(n_heads):                                          # head-major split
        q_ref[0, hh] = (y[:, hh * hd:(hh + 1) * hd] * scale).astype(jnp.bfloat16)
        k_ref[0, hh] = y[:, C + hh * hd:C + (hh + 1) * hd].astype(jnp.bfloat16)
        v_ref[0, hh] = y[:, 2 * C + hh * hd:2 * C + (hh + 1) * hd].astype(jnp.bfloat16)


# ---------------------------------------------------------------------------
# Kernel 2: masked multi-head attention + output projection + residual
#           (grid = (B, T//tq); query tiles streamed, per-head K/V slabs resident)
# TODO(synk): for very long sequences (2*T*C > VMEM budget), stream K/V in key
#             tiles with an online-softmax accumulator and skip tiles above the
#             causal diagonal with pl.when (flash-style).
# ---------------------------------------------------------------------------
def _attn_kernel(n_heads, x_ref, q_ref, k_ref, v_ref, bias_ref, wo_ref, bo_ref, o_ref):
    tq = x_ref.shape[1]
    C = x_ref.shape[2]
    T = k_ref.shape[2]
    hd = C // n_heads
    qstart = pl.program_id(1) * tq

    # fused causal + padding additive bias (finite), shared across all heads
    row = qstart + lax.broadcasted_iota(jnp.int32, (tq, T), 0)
    col = lax.broadcasted_iota(jnp.int32, (tq, T), 1)
    bias = jnp.where(row >= col, 0.0, _MASK_NEG) + bias_ref[0]         # (tq, T) f32

    wo = wo_ref[...]                                                   # (C, C) bf16
    acc = x_ref[0].astype(jnp.float32) + bo_ref[...]                   # residual + bo

    for hh in range(n_heads):
        q = q_ref[0, hh]                                               # (tq, hd) bf16 (pre-scaled)
        k = k_ref[0, hh]                                               # (T, hd)  bf16
        v = v_ref[0, hh]                                               # (T, hd)  bf16
        # scores: q @ k^T with bf16 operands, f32 accumulation on the MXU
        s = lax.dot_general(q, k, (((1,), (1,)), ((), ())),
                            preferred_element_type=jnp.float32) + bias
        m = jnp.max(s, axis=-1, keepdims=True)
        p = jnp.exp(s - m)
        p = p * pl.reciprocal(jnp.sum(p, axis=-1, keepdims=True), approx=True)
        # (attention dropout is identity at inference)
        ctx = jnp.dot(p.astype(jnp.bfloat16), v,
                      preferred_element_type=jnp.float32)              # (tq, hd)
        acc = acc + jnp.dot(ctx.astype(jnp.bfloat16),
                            wo[hh * hd:(hh + 1) * hd, :],
                            preferred_element_type=jnp.float32)
    # (output dropout is identity at inference)
    o_ref[0] = acc.astype(o_ref.dtype)                                 # residual 1


# ---------------------------------------------------------------------------
# Kernel 3: LN2 + FFN (gelu) + residual, hidden dim (4C) streamed in tiles
#           (grid = (B, T//tq, 4C//th), last axis "arbitrary" with accumulator)
# ---------------------------------------------------------------------------
def _ffn_kernel(x_ref, lnw_ref, lnb_ref, w1_ref, b1_ref, w2_ref, b2_ref, o_ref,
                acc_ref, h_ref):
    j = pl.program_id(2)

    @pl.when(j == 0)
    def _():
        x = x_ref[0].astype(jnp.float32)                               # (tq, C)
        acc_ref[...] = x + b2_ref[...]                                 # residual + fc2 bias
        h_ref[...] = _layernorm(x, lnw_ref[...], lnb_ref[...]).astype(jnp.bfloat16)

    ff = jnp.dot(h_ref[...], w1_ref[...],
                 preferred_element_type=jnp.float32) + b1_ref[...]     # (tq, th)
    ff = _gelu_tanh(ff)
    acc_ref[...] += jnp.dot(ff.astype(jnp.bfloat16), w2_ref[...],
                            preferred_element_type=jnp.float32)

    @pl.when(j == pl.num_programs(2) - 1)
    def _():
        # (ffn dropout is identity at inference)
        o_ref[0] = acc_ref[...].astype(o_ref.dtype)                    # residual 2


# ---------------------------------------------------------------------------
# Kernel 4a: final LayerNorm (hoisted out of the vocab loop)
# Kernel 4b: lm_head matmul, vocab axis outermost so wlm streams over HBM once
# ---------------------------------------------------------------------------
def _lnf_kernel(x_ref, w_ref, b_ref, o_ref):
    o_ref[0] = _layernorm(x_ref[0].astype(jnp.float32),
                          w_ref[...], b_ref[...]).astype(o_ref.dtype)


def _lm_head_kernel(x_ref, w_ref, o_ref):
    o_ref[0] = jnp.dot(x_ref[0], w_ref[...],
                       preferred_element_type=jnp.float32).astype(o_ref.dtype)


# ---------------------------------------------------------------------------
# Tiling / compiler-parameter helpers
# ---------------------------------------------------------------------------
def _vmem_limit():
    try:
        cap = pltpu.get_tpu_info().vmem_capacity_bytes
        return int(min(0.75 * cap, 96 * 1024 * 1024))
    except Exception:
        return 48 * 1024 * 1024


def _seq_tiling(T, pref=256):
    # v6e/v7x MXU is 256 wide; pad T up instead of falling back to tiny tiles.
    if T <= pref:
        Tpad = ((T + 7) // 8) * 8
        return Tpad, Tpad
    Tpad = ((T + 127) // 128) * 128
    tq = pref if Tpad % pref == 0 else 128
    return Tpad, tq


def _vocab_tiling(V, pref=2048):
    if V <= pref:
        Vpad = ((V + 127) // 128) * 128
        return Vpad, Vpad
    Vpad = ((V + pref - 1) // pref) * pref
    return Vpad, pref


def _ffn_hidden_tile(F, pref=2048):
    if F <= pref:
        return F
    for th in range(pref, 127, -128):
        if F % th == 0:
            return th
    return F     # fallback: keep the hidden dim resident (F not a multiple of 128)


def _cparams(vmem, semantics):
    return pltpu.CompilerParams(dimension_semantics=semantics, vmem_limit_bytes=vmem)


# ---------------------------------------------------------------------------
# Wrappers calling pallas_call
# ---------------------------------------------------------------------------
# TODO(synk): once verified on the target jax version, mark the constant-index
# weight/LN BlockSpecs with pipeline_mode=pl.Buffered(1) to halve their VMEM
# footprint (they never re-fetch, so the second pipeline buffer is pure waste).
def run_block(x, pad_bias, blk, n_heads, tq):
    B, Tpad, C = x.shape
    nq = Tpad // tq
    hd = C // n_heads
    vmem = _vmem_limit()
    scale = 1.0 / math.sqrt(hd)

    # --- kernel 1: LN1 + QKV projection, head-major outputs, scale folded into Q
    qkv_out_spec = pl.BlockSpec((1, n_heads, tq, hd), lambda b, i: (b, 0, i, 0))
    q, k, v = pl.pallas_call(
        functools.partial(_ln_qkv_kernel, n_heads, scale),
        grid=(B, nq),
        in_specs=[pl.BlockSpec((1, tq, C), lambda b, i: (b, i, 0)),
                  pl.BlockSpec((1, C), lambda b, i: (0, 0)),
                  pl.BlockSpec((1, C), lambda b, i: (0, 0)),
                  pl.BlockSpec((C, 3 * C), lambda b, i: (0, 0)),
                  pl.BlockSpec((1, 3 * C), lambda b, i: (0, 0))],
        out_specs=[qkv_out_spec, qkv_out_spec, qkv_out_spec],
        out_shape=[jax.ShapeDtypeStruct((B, n_heads, Tpad, hd), jnp.bfloat16)] * 3,
        compiler_params=_cparams(vmem, ("parallel", "parallel")),
        cost_estimate=pl.CostEstimate(
            flops=int(2 * B * Tpad * C * 3 * C), transcendentals=0,
            bytes_accessed=int(B * Tpad * C * 2 + C * 3 * C * 2 + 3 * B * Tpad * C * 2)),
    )(x, blk["ln1_w"], blk["ln1_b"], blk["wqkv"], blk["bqkv"])

    # --- kernel 2: masked multi-head self-attention + output proj + residual ---
    # K/V are fetched once per batch element (index map constant across seq tiles).
    x = pl.pallas_call(
        functools.partial(_attn_kernel, n_heads),
        grid=(B, nq),
        in_specs=[pl.BlockSpec((1, tq, C), lambda b, i: (b, i, 0)),              # residual x
                  pl.BlockSpec((1, n_heads, tq, hd), lambda b, i: (b, 0, i, 0)),  # Q tile
                  pl.BlockSpec((1, n_heads, Tpad, hd), lambda b, i: (b, 0, 0, 0)),  # K (resident)
                  pl.BlockSpec((1, n_heads, Tpad, hd), lambda b, i: (b, 0, 0, 0)),  # V (resident)
                  pl.BlockSpec((1, 1, Tpad), lambda b, i: (b, 0, 0)),            # padding bias
                  pl.BlockSpec((C, C), lambda b, i: (0, 0)),                     # wo
                  pl.BlockSpec((1, C), lambda b, i: (0, 0))],                    # bo
        out_specs=pl.BlockSpec((1, tq, C), lambda b, i: (b, i, 0)),
        out_shape=jax.ShapeDtypeStruct((B, Tpad, C), jnp.bfloat16),
        compiler_params=_cparams(vmem, ("parallel", "parallel")),
        cost_estimate=pl.CostEstimate(
            flops=int(4 * B * Tpad * Tpad * C + 2 * B * Tpad * C * C),
            transcendentals=int(B * n_heads * Tpad * Tpad),
            bytes_accessed=int(4 * B * Tpad * C * 2 + C * C * 2 + B * Tpad * C * 2)),
    )(x, q, k, v, pad_bias, blk["wo"], blk["bo"])

    # --- kernel 3: LN2 + FFN (hidden dim streamed in tiles) + residual ---------
    # TODO(synk): for small C this could be fused with kernel 2 to avoid one
    #             (B,T,C) HBM round trip of the residual stream.
    th = _ffn_hidden_tile(4 * C)
    nh = (4 * C) // th
    x = pl.pallas_call(
        _ffn_kernel,
        grid=(B, nq, nh),
        in_specs=[pl.BlockSpec((1, tq, C), lambda b, i, j: (b, i, 0)),
                  pl.BlockSpec((1, C), lambda b, i, j: (0, 0)),
                  pl.BlockSpec((1, C), lambda b, i, j: (0, 0)),
                  pl.BlockSpec((C, th), lambda b, i, j: (0, j)),
                  pl.BlockSpec((1, th), lambda b, i, j: (0, j)),
                  pl.BlockSpec((th, C), lambda b, i, j: (j, 0)),
                  pl.BlockSpec((1, C), lambda b, i, j: (0, 0))],
        out_specs=pl.BlockSpec((1, tq, C), lambda b, i, j: (b, i, 0)),
        out_shape=jax.ShapeDtypeStruct((B, Tpad, C), jnp.bfloat16),
        scratch_shapes=[pltpu.VMEM((tq, C), jnp.float32),     # residual/output accumulator
                        pltpu.VMEM((tq, C), jnp.bfloat16)],   # cached LN2(x)
        compiler_params=_cparams(vmem, ("parallel", "parallel", "arbitrary")),
        cost_estimate=pl.CostEstimate(
            flops=int(16 * B * Tpad * C * C), transcendentals=int(4 * B * Tpad * C),
            bytes_accessed=int(2 * B * Tpad * C * 2 + 8 * C * C * 2)),
    )(x, blk["ln2_w"], blk["ln2_b"], blk["w1"], blk["b1"], blk["w2"], blk["b2"])
    return x


def run_lm_head(x, lnf_w, lnf_b, wlm, tq):
    B, Tpad, C = x.shape
    V = wlm.shape[1]
    Vpad, tv = _vocab_tiling(V)
    if Vpad != V:
        wlm = jnp.pad(wlm, ((0, 0), (0, Vpad - V)))           # lane-dense vocab tiles
    nq = Tpad // tq
    nv = Vpad // tv
    vmem = _vmem_limit()

    # final LayerNorm computed once per token (hoisted out of the vocab loop)
    xn = pl.pallas_call(
        _lnf_kernel,
        grid=(B, nq),
        in_specs=[pl.BlockSpec((1, tq, C), lambda b, i: (b, i, 0)),
                  pl.BlockSpec((1, C), lambda b, i: (0, 0)),
                  pl.BlockSpec((1, C), lambda b, i: (0, 0))],
        out_specs=pl.BlockSpec((1, tq, C), lambda b, i: (b, i, 0)),
        out_shape=jax.ShapeDtypeStruct((B, Tpad, C), jnp.bfloat16),
        compiler_params=_cparams(vmem, ("parallel", "parallel")),
    )(x, lnf_w, lnf_b)

    # vocab axis outermost: wlm streams over HBM exactly once; x tiles repeat
    return pl.pallas_call(
        _lm_head_kernel,
        grid=(nv, B, nq),
        in_specs=[pl.BlockSpec((1, tq, C), lambda v, b, i: (b, i, 0)),
                  pl.BlockSpec((C, tv), lambda v, b, i: (0, v))],
        out_specs=pl.BlockSpec((1, tq, tv), lambda v, b, i: (b, i, v)),
        out_shape=jax.ShapeDtypeStruct((B, Tpad, Vpad), jnp.bfloat16),
        compiler_params=_cparams(vmem, ("parallel", "parallel", "parallel")),
        cost_estimate=pl.CostEstimate(
            flops=int(2 * B * Tpad * C * Vpad), transcendentals=0,
            bytes_accessed=int(B * Tpad * C * 2 + C * Vpad * 2 + B * Tpad * Vpad * 2)),
    )(xn, wlm)


def gpt_forward(tokens, attention_mask, params, cfg):
    """tokens: (B, T) int32; attention_mask: (B, T) float (1 = keep, 0 = pad)."""
    B, T = tokens.shape
    V = cfg["vocab_size"]

    tok_emb = params["wte"][tokens]                      # (B, T, C) gather (plain-JAX glue)
    pos_emb = params["wpe"][:T][None, :, :]              # (1, T, C)
    x = (tok_emb + pos_emb).astype(jnp.bfloat16)         # residual stream carried in bf16
    # input_dropout is identity at inference

    Tpad, tq = _seq_tiling(T)
    mask = attention_mask.astype(jnp.float32)
    if Tpad != T:
        x = jnp.pad(x, ((0, 0), (0, Tpad - T), (0, 0)))
        mask = jnp.pad(mask, ((0, 0), (0, Tpad - T)))    # padded keys masked out
    pad_bias = ((1.0 - mask) * _MASK_NEG).reshape(B, 1, Tpad)

    for blk in params["blocks"]:
        x = run_block(x, pad_bias, blk, cfg["n_heads"], tq)
    logits = run_lm_head(x, params["lnf_w"], params["lnf_b"], params["wlm"], tq)
    return logits[:, :T, :V]                             # drop seq / vocab padding


# ---------------------------------------------------------------------------
# Deterministic parameter initialization (shapes from the module __init__)
# Matmul weights are bf16 (MXU operands / half DMA); biases & LN params f32.
# ---------------------------------------------------------------------------
def init_params(key, cfg):
    C, V, BS, L = cfg["embedding_dim"], cfg["vocab_size"], cfg["block_size"], cfg["n_layers"]

    def normal(k, shape, dtype=jnp.float32, scale=0.02):
        return (scale * jax.random.normal(k, shape)).astype(dtype)

    keys = jax.random.split(key, 3 + 4 * L)
    params = {
        "wte": normal(keys[0], (V, C)),
        "wpe": normal(keys[1], (BS, C)),
        "wlm": normal(keys[2], (C, V), jnp.bfloat16),
        "lnf_w": jnp.ones((1, C), jnp.float32),
        "lnf_b": jnp.zeros((1, C), jnp.float32),
        "blocks": [],
    }
    for li in range(L):
        k = keys[3 + 4 * li: 3 + 4 * (li + 1)]
        params["blocks"].append({
            "ln1_w": jnp.ones((1, C), jnp.float32),
            "ln1_b": jnp.zeros((1, C), jnp.float32),
            "wqkv": normal(k[0], (C, 3 * C), jnp.bfloat16),
            "bqkv": jnp.zeros((1, 3 * C), jnp.float32),
            "wo": normal(k[1], (C, C), jnp.bfloat16),
            "bo": jnp.zeros((1, C), jnp.float32),
            "ln2_w": jnp.ones((1, C), jnp.float32),
            "ln2_b": jnp.zeros((1, C), jnp.float32),
            "w1": normal(k[2], (C, 4 * C), jnp.bfloat16),
            "b1": jnp.zeros((1, 4 * C), jnp.float32),
            "w2": normal(k[3], (4 * C, C), jnp.bfloat16),
            "b2": jnp.zeros((1, C), jnp.float32),
        })
    return params


# TODO(synk): dropout layers (input/attention/output/ffn) are identity here
# (inference mode); training-mode stochastic dropout is not implemented.

if __name__ == "__main__":
    cfg = dict(vocab_size=64, block_size=8, embedding_dim=32, n_heads=4, n_layers=2)
    B, T = 2, 8

    root = jax.random.PRNGKey(0)
    k_params, k_tok = jax.random.split(root)
    params = init_params(k_params, cfg)

    tokens = jax.random.randint(k_tok, (B, T), 0, cfg["vocab_size"], dtype=jnp.int32)
    attention_mask = jnp.ones((B, T), jnp.float32)

    logits = gpt_forward(tokens, attention_mask, params, cfg)
    logits = jax.block_until_ready(logits)
    assert logits.shape == (B, T, cfg["vocab_size"]), logits.shape
    assert bool(jnp.all(jnp.isfinite(logits.astype(jnp.float32))))
    print("KERNEL_OK")
</pallas_src>

<mosaic_0001>
module attributes {stable_mosaic.version = 11 : i64} {
  func.func @_ln_qkv_kernel(%arg0: i32, %arg1: i32, %arg2: memref<1x8x32xbf16, #tpu.memory_space<vmem>>, %arg3: memref<1x32xf32, #tpu.memory_space<vmem>>, %arg4: memref<1x32xf32, #tpu.memory_space<vmem>>, %arg5: memref<32x96xbf16, #tpu.memory_space<vmem>>, %arg6: memref<1x96xf32, #tpu.memory_space<vmem>>, %arg7: memref<1x4x8x8xbf16, #tpu.memory_space<vmem>>, %arg8: memref<1x4x8x8xbf16, #tpu.memory_space<vmem>>, %arg9: memref<1x4x8x8xbf16, #tpu.memory_space<vmem>>) attributes {dimension_semantics = [#tpu.dimension_semantics<parallel>, #tpu.dimension_semantics<parallel>], iteration_bounds = array<i64: 2, 1>, scalar_prefetch = 0 : i64, scratch_operands = 0 : i64, tpu.core_type = #tpu.core_type<tc>, window_params = [{transform_indices = @transform_0, window_bounds = array<i64: 1, 8, 32>}, {pipeline_mode = #tpu.pipeline_mode<synchronous>, transform_indices = @transform_1, window_bounds = array<i64: 1, 32>}, {pipeline_mode = #tpu.pipeline_mode<synchronous>, transform_indices = @transform_2, window_bounds = array<i64: 1, 32>}, {pipeline_mode = #tpu.pipeline_mode<synchronous>, transform_indices = @transform_3, window_bounds = array<i64: 32, 96>}, {pipeline_mode = #tpu.pipeline_mode<synchronous>, transform_indices = @transform_4, window_bounds = array<i64: 1, 96>}, {transform_indices = @transform_5, window_bounds = array<i64: 1, 4, 8, 8>}, {transform_indices = @transform_6, window_bounds = array<i64: 1, 4, 8, 8>}, {transform_indices = @transform_7, window_bounds = array<i64: 1, 4, 8, 8>}]} {
    %c0 = arith.constant 0 : index
    %c0_0 = arith.constant 0 : index
    %c0_1 = arith.constant 0 : index
    %0 = vector.load %arg2[%c0, %c0_0, %c0_1] : memref<1x8x32xbf16, #tpu.memory_space<vmem>>, vector<1x8x32xbf16>
    %1 = vector.shape_cast %0 : vector<1x8x32xbf16> to vector<8x32xbf16>
    %2 = arith.extf %1 : vector<8x32xbf16> to vector<8x32xf32>
    %c0_2 = arith.constant 0 : index
    %c0_3 = arith.constant 0 : index
    %3 = vector.load %arg3[%c0_2, %c0_3] : memref<1x32xf32, #tpu.memory_space<vmem>>, vector<1x32xf32>
    %c0_4 = arith.constant 0 : index
    %c0_5 = arith.constant 0 : index
    %4 = vector.load %arg4[%c0_4, %c0_5] : memref<1x32xf32, #tpu.memory_space<vmem>>, vector<1x32xf32>
    %cst = arith.constant dense<0.000000e+00> : vector<8xf32>
    %5 = vector.multi_reduction <add>, %2, %cst [1] : vector<8x32xf32> to vector<8xf32>
    %6 = vector.shape_cast %5 : vector<8xf32> to vector<8x1xf32>
    %cst_6 = arith.constant 3.200000e+01 : f32
    %7 = vector.broadcast %cst_6 : f32 to vector<8x1xf32>
    %8 = arith.divf %6, %7 : vector<8x1xf32>
    %9 = vector.broadcast %8 : vector<8x1xf32> to vector<8x32xf32>
    %10 = arith.subf %2, %9 : vector<8x32xf32>
    %11 = arith.mulf %10, %10 : vector<8x32xf32>
    %cst_7 = arith.constant dense<0.000000e+00> : vector<8xf32>
    %12 = vector.multi_reduction <add>, %11, %cst_7 [1] : vector<8x32xf32> to vector<8xf32>
    %13 = vector.shape_cast %12 : vector<8xf32> to vector<8x1xf32>
    %cst_8 = arith.constant 3.200000e+01 : f32
    %14 = vector.broadcast %cst_8 : f32 to vector<8x1xf32>
    %15 = arith.divf %13, %14 : vector<8x1xf32>
    %16 = vector.broadcast %8 : vector<8x1xf32> to vector<8x32xf32>
    %17 = arith.subf %2, %16 : vector<8x32xf32>
    %cst_9 = arith.constant 9.99999974E-6 : f32
    %18 = vector.broadcast %cst_9 : f32 to vector<8x1xf32>
    %19 = arith.addf %15, %18 : vector<8x1xf32>
    %20 = math.rsqrt %19 : vector<8x1xf32>
    %21 = vector.broadcast %20 : vector<8x1xf32> to vector<8x32xf32>
    %22 = arith.mulf %17, %21 : vector<8x32xf32>
    %23 = vector.broadcast %3 : vector<1x32xf32> to vector<8x32xf32>
    %24 = arith.mulf %22, %23 : vector<8x32xf32>
    %25 = vector.broadcast %4 : vector<1x32xf32> to vector<8x32xf32>
    %26 = arith.addf %24, %25 : vector<8x32xf32>
    %27 = arith.truncf %26 : vector<8x32xf32> to vector<8x32xbf16>
    %c0_10 = arith.constant 0 : index
    %c0_11 = arith.constant 0 : index
    %28 = vector.load %arg5[%c0_10, %c0_11] : memref<32x96xbf16, #tpu.memory_space<vmem>>, vector<32x96xbf16>
    %cst_12 = arith.constant dense<0.000000e+00> : vector<8x96xf32>
    %29 = tpu.matmul %27, %28, %cst_12 {dimension_numbers = #tpu.dot_dimension_numbers<[1], [0], [0], [1], [0, 0, 1, 1], [], []>} : vector<8x32xbf16>, vector<32x96xbf16>, vector<8x96xf32> -> vector<8x96xf32>
    %c0_13 = arith.constant 0 : index
    %c0_14 = arith.constant 0 : index
    %30 = vector.load %arg6[%c0_13, %c0_14] : memref<1x96xf32, #tpu.memory_space<vmem>>, vector<1x96xf32>
    %31 = vector.broadcast %30 : vector<1x96xf32> to vector<8x96xf32>
    %32 = arith.addf %29, %31 : vector<8x96xf32>
    %33 = vector.extract_strided_slice %32 {offsets = [0, 0], sizes = [8, 8], strides = [1, 1]} : vector<8x96xf32> to vector<8x8xf32>
    %cst_15 = arith.constant 0.353553385 : f32
    %34 = vector.broadcast %cst_15 : f32 to vector<8x8xf32>
    %35 = arith.mulf %33, %34 : vector<8x8xf32>
    %36 = arith.truncf %35 : vector<8x8xf32> to vector<8x8xbf16>
    %c0_16 = arith.constant 0 : index
    %c0_17 = arith.constant 0 : index
    %c0_18 = arith.constant 0 : index
    %c0_19 = arith.constant 0 : index
    %37 = vector.load %arg7[%c0_16, %c0_17, %c0_18, %c0_19] : memref<1x4x8x8xbf16, #tpu.memory_space<vmem>>, vector<1x1x8x8xbf16>
    %38 = vector.shape_cast %37 : vector<1x1x8x8xbf16> to vector<8x8xbf16>
    %39 = vector.shape_cast %36 : vector<8x8xbf16> to vector<1x1x8x8xbf16>
    tpu.vector_store %arg7[%c0_16, %c0_17, %c0_18, %c0_19], %39 {strides = array<i32>} : memref<1x4x8x8xbf16, #tpu.memory_space<vmem>>, vector<1x1x8x8xbf16>,
    %40 = vector.extract_strided_slice %32 {offsets = [0, 32], sizes = [8, 8], strides = [1, 1]} : vector<8x96xf32> to vector<8x8xf32>
    %41 = arith.truncf %40 : vector<8x8xf32> to vector<8x8xbf16>
    %c0_20 = arith.constant 0 : index
    %c0_21 = arith.constant 0 : index
    %c0_22 = arith.constant 0 : index
    %c0_23 = arith.constant 0 : index
    %42 = vector.load %arg8[%c0_20, %c0_21, %c0_22, %c0_23] : memref<1x4x8x8xbf16, #tpu.memory_space<vmem>>, vector<1x1x8x8xbf16>
    %43 = vector.shape_cast %42 : vector<1x1x8x8xbf16> to vector<8x8xbf16>
    %44 = vector.shape_cast %41 : vector<8x8xbf16> to vector<1x1x8x8xbf16>
    tpu.vector_store %arg8[%c0_20, %c0_21, %c0_22, %c0_23], %44 {strides = array<i32>} : memref<1x4x8x8xbf16, #tpu.memory_space<vmem>>, vector<1x1x8x8xbf16>,
    %45 = vector.extract_strided_slice %32 {offsets = [0, 64], sizes = [8, 8], strides = [1, 1]} : vector<8x96xf32> to vector<8x8xf32>
    %46 = arith.truncf %45 : vector<8x8xf32> to vector<8x8xbf16>
    %c0_24 = arith.constant 0 : index
    %c0_25 = arith.constant 0 : index
    %c0_26 = arith.constant 0 : index
    %c0_27 = arith.constant 0 : index
    %47 = vector.load %arg9[%c0_24, %c0_25, %c0_26, %c0_27] : memref<1x4x8x8xbf16, #tpu.memory_space<vmem>>, vector<1x1x8x8xbf16>
    %48 = vector.shape_cast %47 : vector<1x1x8x8xbf16> to vector<8x8xbf16>
    %49 = vector.shape_cast %46 : vector<8x8xbf16> to vector<1x1x8x8xbf16>
    tpu.vector_store %arg9[%c0_24, %c0_25, %c0_26, %c0_27], %49 {strides = array<i32>} : memref<1x4x8x8xbf16, #tpu.memory_space<vmem>>, vector<1x1x8x8xbf16>,
    %50 = vector.extract_strided_slice %32 {offsets = [0, 8], sizes = [8, 8], strides = [1, 1]} : vector<8x96xf32> to vector<8x8xf32>
    %cst_28 = arith.constant 0.353553385 : f32
    %51 = vector.broadcast %cst_28 : f32 to vector<8x8xf32>
    %52 = arith.mulf %50, %51 : vector<8x8xf32>
    %53 = arith.truncf %52 : vector<8x8xf32> to vector<8x8xbf16>
    %c0_29 = arith.constant 0 : index
    %c1 = arith.constant 1 : index
    %c0_30 = arith.constant 0 : index
    %c0_31 = arith.constant 0 : index
    %54 = vector.load %arg7[%c0_29, %c1, %c0_30, %c0_31] : memref<1x4x8x8xbf16, #tpu.memory_space<vmem>>, vector<1x1x8x8xbf16>
    %55 = vector.shape_cast %54 : vector<1x1x8x8xbf16> to vector<8x8xbf16>
    %56 = vector.shape_cast %53 : vector<8x8xbf16> to vector<1x1x8x8xbf16>
    tpu.vector_store %arg7[%c0_29, %c1, %c0_30, %c0_31], %56 {strides = array<i32>} : memref<1x4x8x8xbf16, #tpu.memory_space<vmem>>, vector<1x1x8x8xbf16>,
    %57 = vector.extract_strided_slice %32 {offsets = [0, 40], sizes = [8, 8], strides = [1, 1]} : vector<8x96xf32> to vector<8x8xf32>
    %58 = arith.truncf %57 : vector<8x8xf32> to vector<8x8xbf16>
    %c0_32 = arith.constant 0 : index
    %c1_33 = arith.constant 1 : index
    %c0_34 = arith.constant 0 : index
    %c0_35 = arith.constant 0 : index
    %59 = vector.load %arg8[%c0_32, %c1_33, %c0_34, %c0_35] : memref<1x4x8x8xbf16, #tpu.memory_space<vmem>>, vector<1x1x8x8xbf16>
    %60 = vector.shape_cast %59 : vector<1x1x8x8xbf16> to vector<8x8xbf16>
    %61 = vector.shape_cast %58 : vector<8x8xbf16> to vector<1x1x8x8xbf16>
    tpu.vector_store %arg8[%c0_32, %c1_33, %c0_34, %c0_35], %61 {strides = array<i32>} : memref<1x4x8x8xbf16, #tpu.memory_space<vmem>>, vector<1x1x8x8xbf16>,
    %62 = vector.extract_strided_slice %32 {offsets = [0, 72], sizes = [8, 8], strides = [1, 1]} : vector<8x96xf32> to vector<8x8xf32>
    %63 = arith.truncf %62 : vector<8x8xf32> to vector<8x8xbf16>
    %c0_36 = arith.constant 0 : index
    %c1_37 = arith.constant 1 : index
    %c0_38 = arith.constant 0 : index
    %c0_39 = arith.constant 0 : index
    %64 = vector.load %arg9[%c0_36, %c1_37, %c0_38, %c0_39] : memref<1x4x8x8xbf16, #tpu.memory_space<vmem>>, vector<1x1x8x8xbf16>
    %65 = vector.shape_cast %64 : vector<1x1x8x8xbf16> to vector<8x8xbf16>
    %66 = vector.shape_cast %63 : vector<8x8xbf16> to vector<1x1x8x8xbf16>
    tpu.vector_store %arg9[%c0_36, %c1_37, %c0_38, %c0_39], %66 {strides = array<i32>} : memref<1x4x8x8xbf16, #tpu.memory_space<vmem>>, vector<1x1x8x8xbf16>,
    %67 = vector.extract_strided_slice %32 {offsets = [0, 16], sizes = [8, 8], strides = [1, 1]} : vector<8x96xf32> to vector<8x8xf32>
    %cst_40 = arith.constant 0.353553385 : f32
    %68 = vector.broadcast %cst_40 : f32 to vector<8x8xf32>
    %69 = arith.mulf %67, %68 : vector<8x8xf32>
    %70 = arith.truncf %69 : vector<8x8xf32> to vector<8x8xbf16>
    %c0_41 = arith.constant 0 : index
    %c2 = arith.constant 2 : index
    %c0_42 = arith.constant 0 : index
    %c0_43 = arith.constant 0 : index
    %71 = vector.load %arg7[%c0_41, %c2, %c0_42, %c0_43] : memref<1x4x8x8xbf16, #tpu.memory_space<vmem>>, vector<1x1x8x8xbf16>
    %72 = vector.shape_cast %71 : vector<1x1x8x8xbf16> to vector<8x8xbf16>
    %73 = vector.shape_cast %70 : vector<8x8xbf16> to vector<1x1x8x8xbf16>
    tpu.vector_store %arg7[%c0_41, %c2, %c0_42, %c0_43], %73 {strides = array<i32>} : memref<1x4x8x8xbf16, #tpu.memory_space<vmem>>, vector<1x1x8x8xbf16>,
    %74 = vector.extract_strided_slice %32 {offsets = [0, 48], sizes = [8, 8], strides = [1, 1]} : vector<8x96xf32> to vector<8x8xf32>
    %75 = arith.truncf %74 : vector<8x8xf32> to vector<8x8xbf16>
    %c0_44 = arith.constant 0 : index
    %c2_45 = arith.constant 2 : index
    %c0_46 = arith.constant 0 : index
    %c0_47 = arith.constant 0 : index
    %76 = vector.load %arg8[%c0_44, %c2_45, %c0_46, %c0_47] : memref<1x4x8x8xbf16, #tpu.memory_space<vmem>>, vector<1x1x8x8xbf16>
    %77 = vector.shape_cast %76 : vector<1x1x8x8xbf16> to vector<8x8xbf16>
    %78 = vector.shape_cast %75 : vector<8x8xbf16> to vector<1x1x8x8xbf16>
    tpu.vector_store %arg8[%c0_44, %c2_45, %c0_46, %c0_47], %78 {strides = array<i32>} : memref<1x4x8x8xbf16, #tpu.memory_space<vmem>>, vector<1x1x8x8xbf16>,
    %79 = vector.extract_strided_slice %32 {offsets = [0, 80], sizes = [8, 8], strides = [1, 1]} : vector<8x96xf32> to vector<8x8xf32>
    %80 = arith.truncf %79 : vector<8x8xf32> to vector<8x8xbf16>
    %c0_48 = arith.constant 0 : index
    %c2_49 = arith.constant 2 : index
    %c0_50 = arith.constant 0 : index
    %c0_51 = arith.constant 0 : index
    %81 = vector.load %arg9[%c0_48, %c2_49, %c0_50, %c0_51] : memref<1x4x8x8xbf16, #tpu.memory_space<vmem>>, vector<1x1x8x8xbf16>
    %82 = vector.shape_cast %81 : vector<1x1x8x8xbf16> to vector<8x8xbf16>
    %83 = vector.shape_cast %80 : vector<8x8xbf16> to vector<1x1x8x8xbf16>
    tpu.vector_store %arg9[%c0_48, %c2_49, %c0_50, %c0_51], %83 {strides = array<i32>} : memref<1x4x8x8xbf16, #tpu.memory_space<vmem>>, vector<1x1x8x8xbf16>,
    %84 = vector.extract_strided_slice %32 {offsets = [0, 24], sizes = [8, 8], strides = [1, 1]} : vector<8x96xf32> to vector<8x8xf32>
    %cst_52 = arith.constant 0.353553385 : f32
    %85 = vector.broadcast %cst_52 : f32 to vector<8x8xf32>
    %86 = arith.mulf %84, %85 : vector<8x8xf32>
    %87 = arith.truncf %86 : vector<8x8xf32> to vector<8x8xbf16>
    %c0_53 = arith.constant 0 : index
    %c3 = arith.constant 3 : index
    %c0_54 = arith.constant 0 : index
    %c0_55 = arith.constant 0 : index
    %88 = vector.load %arg7[%c0_53, %c3, %c0_54, %c0_55] : memref<1x4x8x8xbf16, #tpu.memory_space<vmem>>, vector<1x1x8x8xbf16>
    %89 = vector.shape_cast %88 : vector<1x1x8x8xbf16> to vector<8x8xbf16>
    %90 = vector.shape_cast %87 : vector<8x8xbf16> to vector<1x1x8x8xbf16>
    tpu.vector_store %arg7[%c0_53, %c3, %c0_54, %c0_55], %90 {strides = array<i32>} : memref<1x4x8x8xbf16, #tpu.memory_space<vmem>>, vector<1x1x8x8xbf16>,
    %91 = vector.extract_strided_slice %32 {offsets = [0, 56], sizes = [8, 8], strides = [1, 1]} : vector<8x96xf32> to vector<8x8xf32>
    %92 = arith.truncf %91 : vector<8x8xf32> to vector<8x8xbf16>
    %c0_56 = arith.constant 0 : index
    %c3_57 = arith.constant 3 : index
    %c0_58 = arith.constant 0 : index
    %c0_59 = arith.constant 0 : index
    %93 = vector.load %arg8[%c0_56, %c3_57, %c0_58, %c0_59] : memref<1x4x8x8xbf16, #tpu.memory_space<vmem>>, vector<1x1x8x8xbf16>
    %94 = vector.shape_cast %93 : vector<1x1x8x8xbf16> to vector<8x8xbf16>
    %95 = vector.shape_cast %92 : vector<8x8xbf16> to vector<1x1x8x8xbf16>
    tpu.vector_store %arg8[%c0_56, %c3_57, %c0_58, %c0_59], %95 {strides = array<i32>} : memref<1x4x8x8xbf16, #tpu.memory_space<vmem>>, vector<1x1x8x8xbf16>,
    %96 = vector.extract_strided_slice %32 {offsets = [0, 88], sizes = [8, 8], strides = [1, 1]} : vector<8x96xf32> to vector<8x8xf32>
    %97 = arith.truncf %96 : vector<8x8xf32> to vector<8x8xbf16>
    %c0_60 = arith.constant 0 : index
    %c3_61 = arith.constant 3 : index
    %c0_62 = arith.constant 0 : index
    %c0_63 = arith.constant 0 : index
    %98 = vector.load %arg9[%c0_60, %c3_61, %c0_62, %c0_63] : memref<1x4x8x8xbf16, #tpu.memory_space<vmem>>, vector<1x1x8x8xbf16>
    %99 = vector.shape_cast %98 : vector<1x1x8x8xbf16> to vector<8x8xbf16>
    %100 = vector.shape_cast %97 : vector<8x8xbf16> to vector<1x1x8x8xbf16>
    tpu.vector_store %arg9[%c0_60, %c3_61, %c0_62, %c0_63], %100 {strides = array<i32>} : memref<1x4x8x8xbf16, #tpu.memory_space<vmem>>, vector<1x1x8x8xbf16>,
    return
  }
  func.func @transform_0(%arg0: i32, %arg1: i32) -> (i32, i32, i32) {
    %c0_i32 = arith.constant 0 : i32
    %c0_i32_0 = arith.constant 0 : i32
    return %arg0, %arg1, %c0_i32 : i32, i32, i32
  }
  func.func @transform_1(%arg0: i32, %arg1: i32) -> (i32, i32) {
    %c0_i32 = arith.constant 0 : i32
    %c0_i32_0 = arith.constant 0 : i32
    %c0_i32_1 = arith.constant 0 : i32
    return %c0_i32, %c0_i32_0 : i32, i32
  }
  func.func @transform_2(%arg0: i32, %arg1: i32) -> (i32, i32) {
    %c0_i32 = arith.constant 0 : i32
    %c0_i32_0 = arith.constant 0 : i32
    %c0_i32_1 = arith.constant 0 : i32
    return %c0_i32, %c0_i32_0 : i32, i32
  }
  func.func @transform_3(%arg0: i32, %arg1: i32) -> (i32, i32) {
    %c0_i32 = arith.constant 0 : i32
    %c0_i32_0 = arith.constant 0 : i32
    %c0_i32_1 = arith.constant 0 : i32
    return %c0_i32, %c0_i32_0 : i32, i32
  }
  func.func @transform_4(%arg0: i32, %arg1: i32) -> (i32, i32) {
    %c0_i32 = arith.constant 0 : i32
    %c0_i32_0 = arith.constant 0 : i32
    %c0_i32_1 = arith.constant 0 : i32
    return %c0_i32, %c0_i32_0 : i32, i32
  }
  func.func @transform_5(%arg0: i32, %arg1: i32) -> (i32, i32, i32, i32) {
    %c0_i32 = arith.constant 0 : i32
    %c0_i32_0 = arith.constant 0 : i32
    %c0_i32_1 = arith.constant 0 : i32
    return %arg0, %c0_i32, %arg1, %c0_i32_0 : i32, i32, i32, i32
  }
  func.func @transform_6(%arg0: i32, %arg1: i32) -> (i32, i32, i32, i32) {
    %c0_i32 = arith.constant 0 : i32
    %c0_i32_0 = arith.constant 0 : i32
    %c0_i32_1 = arith.constant 0 : i32
    return %arg0, %c0_i32, %arg1, %c0_i32_0 : i32, i32, i32, i32
  }
  func.func @transform_7(%arg0: i32, %arg1: i32) -> (i32, i32, i32, i32) {
    %c0_i32 = arith.constant 0 : i32
    %c0_i32_0 = arith.constant 0 : i32
    %c0_i32_1 = arith.constant 0 : i32
    return %arg0, %c0_i32, %arg1, %c0_i32_0 : i32, i32, i32, i32
  }
}

</mosaic_0001>

<llo_original>
// kernel: tpu_custom_call.1
$region0: #{tpu_custom_call.1}
  #allocation0 [shape = 'u32[]', space=smem, size = 0x4, offset = 0x4, fixed_abs, tag = 'smem constant byte address 0x4 - core index']
  #allocation1 [shape = 'u32[72,128]{1,0:T(1,128)}', space=vmem, size = 0x9000, scoped, tag = 'internal scratch']
  %s0 = inlined_call_operand.hbm [shape: bf16[2,8,32], index: 0, kind: input, shape index: {}]
  %s1 = inlined_call_operand.hbm [shape: f32[1,32], index: 1, kind: input, shape index: {}]
  %s2 = inlined_call_operand.vmem [shape: f32[1,32], index: 2, kind: input, shape index: {}]
  %s3 = inlined_call_operand.hbm [shape: bf16[32,96], index: 3, kind: input, shape index: {}]
  %s4 = inlined_call_operand.vmem [shape: f32[1,96], index: 4, kind: input, shape index: {}]
  %s5 = inlined_call_operand.hbm [shape: bf16[2,4,8,8], index: 5, kind: output, shape index: {0}]
  %s6 = inlined_call_operand.hbm [shape: bf16[2,4,8,8], index: 6, kind: output, shape index: {1}]
  %s7 = inlined_call_operand.hbm [shape: bf16[2,4,8,8], index: 7, kind: output, shape index: {2}]
  %8 = xla_tuple %s5, %s6, %s7
  %s9 = sld [smem:[#allocation0]]
  $region81: #{tpu_custom_call.1} parent=0
    _
  %s11 = ssub.s32 1, %s9
  %s12 = scalar_select 0, %s11, %s9
  $region1: #{tpu_custom_call.1} parent=0
    #allocation2 [shape = 'u8[4096]{0}', space=vmem, size = 0x1000, scoped, tag = 'input window, operand 0']
    #allocation3 [shape = 's32[2]{0}', space=sflag, size = 0x8, scoped, tag = 'scoped memory for tpu_custom_call.1']
    #allocation4 [shape = 's32[2]{0}', space=sflag, size = 0x8, scoped, tag = 'scoped memory for tpu_custom_call.1']
    #allocation5 [shape = 'u8[512]{0}', space=vmem, size = 0x400, scoped, tag = 'input window, operand 1, single buffered']
    #allocation6 [shape = 's32[1]{0}', space=sflag, size = 0x4, scoped, tag = 'scoped memory for tpu_custom_call.1']
    #allocation7 [shape = 'u8[8192]{0}', space=vmem, size = 0x2000, scoped, tag = 'input window, operand 3, single buffered']
    #allocation8 [shape = 'u8[16384]{0}', space=vmem, size = 0x4000, scoped, tag = 'output window, operand 0']
    #allocation9 [shape = 'u8[16384]{0}', space=vmem, size = 0x4000, scoped, tag = 'output window, operand 1']
    #allocation10 [shape = 's32[2]{0}', space=sflag, size = 0x8, scoped, tag = 'scoped memory for tpu_custom_call.1']
    #allocation11 [shape = 'u8[16384]{0}', space=vmem, size = 0x4000, scoped, tag = 'output window, operand 2']
    %13 = vsyncpa [#allocation3], 0
    %s14 = scalar_lea.sflag [#allocation3], 1
    %15 = vsyncpa %s14, 0
    %16 = vsyncpa [#allocation6], 0
    %17 = vsyncpa [#allocation4], 0
    %s18 = scalar_lea.sflag [#allocation4], 1
    %19 = vsyncpa %s18, 0
    %20 = vsyncpa [#allocation10], 0
    %s21 = scalar_lea.sflag [#allocation10], 1
    %22 = vsyncpa %s21, 0
    loop: start=0, step=1, limit=4
    $region2: #{tpu_custom_call.1} parent=1 // loop_pre_header
      _
    $region3: #{tpu_custom_call.1} parent=1 // loop_header
      %s24 = sphi 0, %s28
      %p25 = scmp.ge.s32.totalorder %s24, 4
      %s31 = sphi 0, %s43
      %s32 = sphi 0, %s39
      %s33 = sphi 0, %s31
      %s34 = sphi 0, %s32
      %s35 = sphi 0, %s33
      %s36 = sphi 0, %s34
      %s48 = sphi 0, %s50
      %s51 = sphi 0, %s48
      %s52 = sphi 0, %s51
      %s68 = sphi 0, %s52
      %s72 = sphi 0, %s72
      %s74 = sphi 0, %s72
      %s75 = sphi 0, %s74
      %s89 = sphi 0, %s75
      %s93 = sphi 0, %s93
      %s95 = sphi 0, %s93
      %s96 = sphi 0, %s95
      %s110 = sphi 0, %s96
      %s114 = sphi 0, %s114
      %s116 = sphi 0, %s114
      %s117 = sphi 0, %s116
      %s131 = sphi 0, %s117
      %s135 = sphi 0, %s135
      %s137 = sphi 0, %s135
      %s138 = sphi 0, %s137
      %s152 = sphi 0, %s138
      %s160 = sphi 0, %s162
      %s163 = sphi 0, %s160
      %s164 = sphi 0, %s163
      %s180 = sphi 0, %s164
      %s188 = sphi 0, %s190
      %s191 = sphi 0, %s188
      %s192 = sphi 0, %s191
      %s208 = sphi 0, %s192
      %s216 = sphi 0, %s218
      %s219 = sphi 0, %s216
      %s220 = sphi 0, %s219
      %s236 = sphi 0, %s220
    $region4: #{tpu_custom_call.1} parent=1 // loop_header_branch
      %27 = sbr.rel (%p25) target = $region8
    $region5: #{tpu_custom_call.1} parent=1 // loop_body
      %s29 = ssub.s32 %s24, 1
      %s30 = ssub.s32 %s24, 2
      %s37 = sadd.s32 1, %s32
      %p38 = scmp.ge.s32.totalorder %s37, 1
      %s39 = scalar_select %p38, 0, %s37
      %s40 = sadd.s32 1, %s31
      %s41 = scalar_select %p38, %s40, %s31
      %p42 = scmp.ge.s32.totalorder %s41, 2
      %s43 = scalar_select %p42, 0, %s41
      %s44 = ssub.s32 %s31, %s43
      %s45 = ssub.s32 %s32, %s39
      %s46 = sor.u32 %s44, %s45
      %p47 = scmp.eq.s32.totalorder %s46, 0
      %s49 = sadd.s32 %s48, 1
      %s50 = scalar_select %p47, %s48, %s49
      %p53 = pneg %p47
      %p54 = scmp.eq.s32.totalorder %s24, 1
      %p55 = por %p53, %p54
      %p56 = scmp.ne.s32.totalorder %s48, %s51
      %p57 = scmp.eq.s32.totalorder %s24, 0
      %p58 = por %p56, %p57
      %p59 = scmp.ne.s32.totalorder %s48, %s51
      %p60 = scmp.eq.s32.totalorder %s29, 1
      %p61 = por %p59, %p60
      %p62 = scmp.ne.s32.totalorder %s51, %s52
      %p63 = scmp.eq.s32.totalorder %s29, 0
      %p64 = por %p62, %p63
      %p65 = scmp.ne.s32.totalorder %s51, %s52
      %p66 = scmp.eq.s32.totalorder %s30, 1
      %p67 = por %p65, %p66
      %p69 = scmp.ne.s32.totalorder %s52, %s68
      %p70 = scmp.eq.s32.totalorder %s30, 0
      %p71 = por %p69, %p70
      %s73 = sadd.s32 %s72, 1
      %p76 = scmp.eq.s32.totalorder %s24, 1
      %p77 = scmp.ne.s32.totalorder %s72, %s74
      %p78 = scmp.eq.s32.totalorder %s24, 0
      %p79 = por %p77, %p78
      %p80 = scmp.ne.s32.totalorder %s72, %s74
      %p81 = scmp.eq.s32.totalorder %s29, 1
      %p82 = por %p80, %p81
      %p83 = scmp.ne.s32.totalorder %s74, %s75
      %p84 = scmp.eq.s32.totalorder %s29, 0
      %p85 = por %p83, %p84
      %p86 = scmp.ne.s32.totalorder %s74, %s75
      %p87 = scmp.eq.s32.totalorder %s30, 1
      %p88 = por %p86, %p87
      %p90 = scmp.ne.s32.totalorder %s75, %s89
      %p91 = scmp.eq.s32.totalorder %s30, 0
      %p92 = por %p90, %p91
      %s94 = sadd.s32 %s93, 1
      %p97 = scmp.eq.s32.totalorder %s24, 1
      %p98 = scmp.ne.s32.totalorder %s93, %s95
      %p99 = scmp.eq.s32.totalorder %s24, 0
      %p100 = por %p98, %p99
      %p101 = scmp.ne.s32.totalorder %s93, %s95
      %p102 = scmp.eq.s32.totalorder %s29, 1
      %p103 = por %p101, %p102
      %p104 = scmp.ne.s32.totalorder %s95, %s96
      %p105 = scmp.eq.s32.totalorder %s29, 0
      %p106 = por %p104, %p105
      %p107 = scmp.ne.s32.totalorder %s95, %s96
      %p108 = scmp.eq.s32.totalorder %s30, 1
      %p109 = por %p107, %p108
      %p111 = scmp.ne.s32.totalorder %s96, %s110
      %p112 = scmp.eq.s32.totalorder %s30, 0
      %p113 = por %p111, %p112
      %s115 = sadd.s32 %s114, 1
      %p118 = scmp.eq.s32.totalorder %s24, 1
      %p119 = scmp.ne.s32.totalorder %s114, %s116
      %p120 = scmp.eq.s32.totalorder %s24, 0
      %p121 = por %p119, %p120
      %p122 = scmp.ne.s32.totalorder %s114, %s116
      %p123 = scmp.eq.s32.totalorder %s29, 1
      %p124 = por %p122, %p123
      %p125 = scmp.ne.s32.totalorder %s116, %s117
      %p126 = scmp.eq.s32.totalorder %s29, 0
      %p127 = por %p125, %p126
      %p128 = scmp.ne.s32.totalorder %s116, %s117
      %p129 = scmp.eq.s32.totalorder %s30, 1
      %p130 = por %p128, %p129
      %p132 = scmp.ne.s32.totalorder %s117, %s131
      %p133 = scmp.eq.s32.totalorder %s30, 0
      %p134 = por %p132, %p133
      %s136 = sadd.s32 %s135, 1
      %p139 = scmp.eq.s32.totalorder %s24, 1
      %p140 = scmp.ne.s32.totalorder %s135, %s137
      %p141 = scmp.eq.s32.totalorder %s24, 0
      %p142 = por %p140, %p141
      %p143 = scmp.ne.s32.totalorder %s135, %s137
      %p144 = scmp.eq.s32.totalorder %s29, 1
      %p145 = por %p143, %p144
      %p146 = scmp.ne.s32.totalorder %s137, %s138
      %p147 = scmp.eq.s32.totalorder %s29, 0
      %p148 = por %p146, %p147
      %p149 = scmp.ne.s32.totalorder %s137, %s138
      %p150 = scmp.eq.s32.totalorder %s30, 1
      %p151 = por %p149, %p150
      %p153 = scmp.ne.s32.totalorder %s138, %s152
      %p154 = scmp.eq.s32.totalorder %s30, 0
      %p155 = por %p153, %p154
      %s156 = ssub.s32 %s31, %s43
      %s157 = ssub.s32 %s32, %s39
      %s158 = sor.u32 %s156, %s157
      %p159 = scmp.eq.s32.totalorder %s158, 0
      %s161 = sadd.s32 %s160, 1
      %s162 = scalar_select %p159, %s160, %s161
      %p165 = pneg %p159
      %p166 = scmp.eq.s32.totalorder %s24, 1
      %p167 = por %p165, %p166
      %p168 = scmp.ne.s32.totalorder %s160, %s163
      %p169 = scmp.eq.s32.totalorder %s24, 0
      %p170 = por %p168, %p169
      %p171 = scmp.ne.s32.totalorder %s160, %s163
      %p172 = scmp.eq.s32.totalorder %s29, 1
      %p173 = por %p171, %p172
      %p174 = scmp.ne.s32.totalorder %s163, %s164
      %p175 = scmp.eq.s32.totalorder %s29, 0
      %p176 = por %p174, %p175
      %p177 = scmp.ne.s32.totalorder %s163, %s164
      %p178 = scmp.eq.s32.totalorder %s30, 1
      %p179 = por %p177, %p178
      %p181 = scmp.ne.s32.totalorder %s164, %s180
      %p182 = scmp.eq.s32.totalorder %s30, 0
      %p183 = por %p181, %p182
      %s184 = ssub.s32 %s31, %s43
      %s185 = ssub.s32 %s32, %s39
      %s186 = sor.u32 %s184, %s185
      %p187 = scmp.eq.s32.totalorder %s186, 0
      %s189 = sadd.s32 %s188, 1
      %s190 = scalar_select %p187, %s188, %s189
      %p193 = pneg %p187
      %p194 = scmp.eq.s32.totalorder %s24, 1
      %p195 = por %p193, %p194
      %p196 = scmp.ne.s32.totalorder %s188, %s191
      %p197 = scmp.eq.s32.totalorder %s24, 0
      %p198 = por %p196, %p197
      %p199 = scmp.ne.s32.totalorder %s188, %s191
      %p200 = scmp.eq.s32.totalorder %s29, 1
      %p201 = por %p199, %p200
      %p202 = scmp.ne.s32.totalorder %s191, %s192
      %p203 = scmp.eq.s32.totalorder %s29, 0
      %p204 = por %p202, %p203
      %p205 = scmp.ne.s32.totalorder %s191, %s192
      %p206 = scmp.eq.s32.totalorder %s30, 1
      %p207 = por %p205, %p206
      %p209 = scmp.ne.s32.totalorder %s192, %s208
      %p210 = scmp.eq.s32.totalorder %s30, 0
      %p211 = por %p209, %p210
      %s212 = ssub.s32 %s31, %s43
      %s213 = ssub.s32 %s32, %s39
      %s214 = sor.u32 %s212, %s213
      %p215 = scmp.eq.s32.totalorder %s214, 0
      %s217 = sadd.s32 %s216, 1
      %s218 = scalar_select %p215, %s216, %s217
      %p221 = pneg %p215
      %p222 = scmp.eq.s32.totalorder %s24, 1
      %p223 = por %p221, %p222
      %p224 = scmp.ne.s32.totalorder %s216, %s219
      %p225 = scmp.eq.s32.totalorder %s24, 0
      %p226 = por %p224, %p225
      %p227 = scmp.ne.s32.totalorder %s216, %s219
      %p228 = scmp.eq.s32.totalorder %s29, 1
      %p229 = por %p227, %p228
      %p230 = scmp.ne.s32.totalorder %s219, %s220
      %p231 = scmp.eq.s32.totalorder %s29, 0
      %p232 = por %p230, %p231
      %p233 = scmp.ne.s32.totalorder %s219, %s220
      %p234 = scmp.eq.s32.totalorder %s30, 1
      %p235 = por %p233, %p234
      %p237 = scmp.ne.s32.totalorder %s220, %s236
      %p238 = scmp.eq.s32.totalorder %s30, 0
      %p239 = por %p237, %p238
      %p240 = scmp.le.s32.totalorder 1, %s24
      %p241 = scmp.lt.s32.totalorder %s24, 3
      %p242 = pnand %p240, %p241
      %p243 = pneg %p242
      // Predicated region
      $region9: #{tpu_custom_call.1} parent=5 // pred_check
        _
      $region10: #{tpu_custom_call.1} parent=5 // pred_check_branch
        %245 = sbr.rel (%p242) target = $region12
      $region11: #{tpu_custom_call.1} parent=5 // pred_region
        %s246 = ssub.s32 %s24, 1
        // Predicated region
        $region13: #{tpu_custom_call.1} parent=11 // pred_check
          %p247 = pneg %p85
        $region14: #{tpu_custom_call.1} parent=11 // pred_check_branch
          %249 = sbr.rel (%p247) target = $region16
        $region15: #{tpu_custom_call.1} parent=11 // pred_region
          %251 = vsyncadd [#allocation6], 0
          %s253 = sshll.u32 %s1, 4
          %s254 = int_to_ptr.hbm [resolvable:$true] %s253
          %s255 = sshll.u32 [#allocation5], 4
          %s256 = int_to_ptr.vmem [resolvable:$true] %s255
          %258 = dma.hbm_to_vmem [thread:$0]  %s254, 16, %s256, [#allocation6]
        $region16: #{tpu_custom_call.1} parent=11 // pred_fallthru
          _
        // Predicated region
        $region17: #{tpu_custom_call.1} parent=11 // pred_check
          %p259 = pneg %p106
        $region18: #{tpu_custom_call.1} parent=11 // pred_check_branch
          %261 = sbr.rel (%p259) target = $region20
        $region19: #{tpu_custom_call.1} parent=11 // pred_region
          _
        $region20: #{tpu_custom_call.1} parent=11 // pred_fallthru
          _
        // Predicated region
        $region21: #{tpu_custom_call.1} parent=11 // pred_check
          %p262 = pneg %p127
        $region22: #{tpu_custom_call.1} parent=11 // pred_check_branch
          %264 = sbr.rel (%p262) target = $region24
        $region23: #{tpu_custom_call.1} parent=11 // pred_region
          %266 = vsyncadd [#allocation6], 0
          %s267 = sshll.u32 %s3, 4
          %s268 = int_to_ptr.hbm [resolvable:$true] %s267
          %s269 = sshll.u32 [#allocation7], 4
          %s270 = int_to_ptr.vmem [resolvable:$true] %s269
          %275 = dma.hbm_to_vmem [thread:$0]  %s268, 256, %s270, [#allocation6], 64, 64, 4
        $region24: #{tpu_custom_call.1} parent=11 // pred_fallthru
          _
        // Predicated region
        $region25: #{tpu_custom_call.1} parent=11 // pred_check
          %p276 = pneg %p148
        $region26: #{tpu_custom_call.1} parent=11 // pred_check_branch
          %278 = sbr.rel (%p276) target = $region28
        $region27: #{tpu_custom_call.1} parent=11 // pred_region
          _
        $region28: #{tpu_custom_call.1} parent=11 // pred_fallthru
          _
      $region12: #{tpu_custom_call.1} parent=5 // pred_fallthru
        _
      %p279 = scmp.lt.s32.totalorder %s24, 2
      // Predicated region
      $region29: #{tpu_custom_call.1} parent=5 // pred_check
        %p280 = pneg %p279
      $region30: #{tpu_custom_call.1} parent=5 // pred_check_branch
        %282 = sbr.rel (%p280) target = $region32
      $region31: #{tpu_custom_call.1} parent=5 // pred_region
        // Predicated region
        $region33: #{tpu_custom_call.1} parent=31 // pred_check
          %p283 = pneg %p58
        $region34: #{tpu_custom_call.1} parent=31 // pred_check_branch
          %285 = sbr.rel (%p283) target = $region36
        $region35: #{tpu_custom_call.1} parent=31 // pred_region
          %s286 = sand.u32 %s48, 1
          %s287 = scalar_lea.sflag [#allocation3], %s286
          %s288 = sand.u32 %s48, 1
          %s289 = smul.addr %s288, 4
          %s290 = scalar_lea.vmem [#allocation2], %s289
          %292 = vsyncadd %s287, 0
          %s293 = sadd.s32 %s32, %s31
          %s294 = smul.addr %s293, 4
          %s295 = scalar_lea.hbm %s0, %s294
          %s297 = sshll.u32 %s295, 4
          %s298 = int_to_ptr.hbm [resolvable:$true] %s297
          %s299 = sshll.u32 %s290, 4
          %s300 = int_to_ptr.vmem [resolvable:$true] %s299
          %302 = dma.hbm_to_vmem [thread:$0]  %s298, 64, %s300, %s287
        $region36: #{tpu_custom_call.1} parent=31 // pred_fallthru
          _
      $region32: #{tpu_custom_call.1} parent=5 // pred_fallthru
        _
      %p303 = scmp.le.s32.totalorder 1, %s24
      %p304 = scmp.lt.s32.totalorder %s24, 3
      %p305 = pnand %p303, %p304
      %p306 = pneg %p305
      // Predicated region
      $region37: #{tpu_custom_call.1} parent=5 // pred_check
        _
      $region38: #{tpu_custom_call.1} parent=5 // pred_check_branch
        %308 = sbr.rel (%p305) target = $region40
      $region39: #{tpu_custom_call.1} parent=5 // pred_region
        %s309 = ssub.s32 %s24, 1
        %s310 = sand.u32 %s51, 1
        %s311 = scalar_lea.sflag [#allocation3], %s310
        %s312 = sand.u32 %s51, 1
        %s313 = smul.addr %s312, 4
        %s314 = scalar_lea.vmem [#allocation2], %s313
        // Predicated region
        $region41: #{tpu_custom_call.1} parent=39 // pred_check
          %p315 = pneg %p64
        $region42: #{tpu_custom_call.1} parent=39 // pred_check_branch
          %317 = sbr.rel (%p315) target = $region44
        $region43: #{tpu_custom_call.1} parent=39 // pred_region
          %319 = dma.done %s311, 64
        $region44: #{tpu_custom_call.1} parent=39 // pred_fallthru
          _
        // Predicated region
        $region45: #{tpu_custom_call.1} parent=39 // pred_check
          %p320 = pneg %p85
        $region46: #{tpu_custom_call.1} parent=39 // pred_check_branch
          %322 = sbr.rel (%p320) target = $region48
        $region47: #{tpu_custom_call.1} parent=39 // pred_region
          %324 = dma.done [#allocation6], 16
        $region48: #{tpu_custom_call.1} parent=39 // pred_fallthru
          _
        // Predicated region
        $region49: #{tpu_custom_call.1} parent=39 // pred_check
          %p325 = pneg %p127
        $region50: #{tpu_custom_call.1} parent=39 // pred_check_branch
          %327 = sbr.rel (%p325) target = $region52
        $region51: #{tpu_custom_call.1} parent=39 // pred_region
          %329 = dma.done [#allocation6], 256
        $region52: #{tpu_custom_call.1} parent=39 // pred_fallthru
          _
        %s330 = sand.u32 %s51, 1
        %s331 = scalar_lea.sflag [#allocation3], %s330
        %s332 = sand.u32 %s51, 1
        %s333 = smul.addr %s332, 4
        %s334 = scalar_lea.vmem [#allocation2], %s333
        %p335 = pneg %p64
        %p336 = pneg %p61
        %p337 = pneg %p85
        %p338 = pneg %p82
        %p339 = pneg %p106
        %p340 = pneg %p103
        %p341 = pneg %p127
        %p342 = pneg %p124
        %p343 = pneg %p148
        %p344 = pneg %p145
        %p345 = pneg %p176
        %p346 = pneg %p173
        %s347 = sand.u32 %s163, 1
        %s348 = scalar_lea.sflag [#allocation4], %s347
        %s349 = sand.u32 %s163, 1
        %s350 = smul.addr %s349, 16
        %s351 = scalar_lea.vmem [#allocation8], %s350
        %p352 = pneg %p204
        %p353 = pneg %p201
        %s354 = sand.u32 %s29, 1
        %s355 = scalar_lea.sflag [#allocation10], %s354
        %s356 = sand.u32 %s191, 1
        %s357 = smul.addr %s356, 16
        %s358 = scalar_lea.vmem [#allocation9], %s357
        %p359 = pneg %p232
        %p360 = pneg %p229
        %s361 = sand.u32 %s29, 1
        %s362 = scalar_lea.sflag [#allocation10], %s361
        %s363 = sand.u32 %s219, 1
        %s364 = smul.addr %s363, 16
        %s365 = scalar_lea.vmem [#allocation11], %s364
        %v367 = vld [vmem:[%s314] sm:$0xf]
        %v368 = vunpack.c.l.bf16 %v367
        %v369 = vld [vmem:[#allocation5] sm:$0x1]
        %v370 = vld [vmem:[%s2] sm:$0x1]
        %vm371 = vcmask 261120
        %v372 = vsel %vm371, %v368, 0.0
        %373 = vadd.xlane.f32.xlu0 %v372
        %v374 = vpop.xlane.xlu0 %373
        %v375 = vrcp.pop 32.0
        %v376 = vmul.f32 32.0, %v375
        %v377 = vsub.f32 1.0, %v376
        %v378 = vmul.f32 %v375, %v377
        %v379 = vadd.f32 %v375, %v378
        %vm380 = vweird.f32 %v375
        %v381 = vsel %vm380, %v375, %v379
        %v382 = vmul.f32 %v374, %v381
        %v383 = vsub.f32 %v368, %v382
        %v384 = vmul.f32 %v383, %v383
        %v385 = vsel %vm371, %v384, 0.0
        %386 = vadd.xlane.f32.xlu0 %v385
        %v387 = vpop.xlane.xlu0 %386
        %v388 = vmul.f32 %v387, %v381
        %v389 = vadd.f32 %v388, 1e-05
        %v390 = vrsqrt.pop %v389
        %v391 = vmul.f32 %v390, %v389
        %v392 = vmul.f32 %v391, %v390
        %v393 = vmul.f32 0.5, %v392
        %v394 = vsub.f32 1.5, %v393
        %v395 = vmul.f32 %v390, %v394
        %vm396 = vweird.f32 %v389
        %vm397 = vweird.f32 %v390
        %vm398 = vmor %vm396, %vm397
        %v399 = vsel %vm398, %v390, %v395
        %v400 = vmul.f32 %v383, %v399
        %v402 = vperm.slane %v369, 0
        %v404 = vmul.f32 %v400, %v402
        %v406 = vperm.slane %v370, 0
        %v408 = vadd.f32 %v404, %v406
        %v409 = vpack.c.bf16 %v408, %v408
        %v410 = vld [vmem:[#allocation7] sm:$0xf]
        %v411 = vld [vmem:[#allocation7 + $0x4] sm:$0xf]
        %v412 = vld [vmem:[#allocation7 + $0x8] sm:$0xf]
        %v413 = vld [vmem:[#allocation7 + $0xc] sm:$0xf]
        %v414 = vld [vmem:[%s4] sm:$0x1]
        %v416 = vperm.slane %v414, 0
        %v422 = vunpack.c.l.b16 %v410
        %v423 = vunpack.c.l.b16 %v411
        %v424 = vunpack.c.l.b16 %v412
        %v425 = vunpack.c.l.b16 %v413
        %v426 = vpack.c.b16 %v423, %v422
        %v427 = vpack.c.b16 %v425, %v424
        %v431 = vsel %vm371, %v409, 0
        %433 = vmatpush.bf16.msra.mxu0 0
        %434 = vmatpush.bf16.msra.mxu0 0
        %435 = vmatpush.bf16.msra.mxu0 0
        %436 = vmatpush.bf16.msra.mxu0 0
        %437 = vmatpush.bf16.msra.mxu0 0
        %438 = vmatpush.bf16.msra.mxu0 0
        %439 = vmatpush.bf16.msra.mxu0 %v427
        %440 = vmatpush.bf16.msra.mxu0 %v426
        %441 = vmatmul.bf16.gmra.mxu0 %v431
        %v442 = vpop.f32.mrf.mxu0
        %v443 = vadd.f32 %v416, %v442
        %v444 = vpop.f32.mrf.mxu0
        %445 = vdwg.mxu0
        %v446 = vmul.f32 %v443, 0.35355338
        %v447 = vpack.c.bf16 %v446, %v446
        %vm448 = vcmask 60416
        %449 = vst.msk [vmem:[%s351] sm:$0xf] %vm448, %v447
        %v450 = vpack.c.bf16 %v443, %v443
        %452 = vrot.lane.b32.xlu0 %v450, 96
        %v453 = vpop.permute.xlu0 %452
        %455 = vst.msk [vmem:[%s358] sm:$0xf] %vm448, %v453
        %456 = vrot.lane.b32.xlu0 %v450, 64
        %v457 = vpop.permute.xlu0 %456
        %459 = vst.msk [vmem:[%s365] sm:$0xf] %vm448, %v457
        %461 = vrot.lane.b32.xlu0 %v447, 120
        %v462 = vpop.permute.xlu0 %461
        %s464 = scalar_lea.vmem %s351, 4 [#allocation8]
        %465 = vst.msk [vmem:[%s464] sm:$0xf] %vm448, %v462
        %466 = vrot.lane.b32.xlu0 %v450, 88
        %v467 = vpop.permute.xlu0 %466
        %s469 = scalar_lea.vmem %s358, 4 [#allocation9]
        %470 = vst.msk [vmem:[%s469] sm:$0xf] %vm448, %v467
        %471 = vrot.lane.b32.xlu0 %v450, 56
        %v472 = vpop.permute.xlu0 %471
        %s474 = scalar_lea.vmem %s365, 4 [#allocation11]
        %475 = vst.msk [vmem:[%s474] sm:$0xf] %vm448, %v472
        %476 = vrot.lane.b32.xlu0 %v447, 112
        %v477 = vpop.permute.xlu0 %476
        %s479 = scalar_lea.vmem %s351, 8 [#allocation8]
        %480 = vst.msk [vmem:[%s479] sm:$0xf] %vm448, %v477
        %481 = vrot.lane.b32.xlu0 %v450, 80
        %v482 = vpop.permute.xlu0 %481
        %s484 = scalar_lea.vmem %s358, 8 [#allocation9]
        %485 = vst.msk [vmem:[%s484] sm:$0xf] %vm448, %v482
        %486 = vrot.lane.b32.xlu0 %v450, 48
        %v487 = vpop.permute.xlu0 %486
        %s489 = scalar_lea.vmem %s365, 8 [#allocation11]
        %490 = vst.msk [vmem:[%s489] sm:$0xf] %vm448, %v487
        %491 = vrot.lane.b32.xlu0 %v447, 104
        %v492 = vpop.permute.xlu0 %491
        %s494 = scalar_lea.vmem %s351, 12 [#allocation8]
        %495 = vst.msk [vmem:[%s494] sm:$0xf] %vm448, %v492
        %496 = vrot.lane.b32.xlu0 %v450, 72
        %v497 = vpop.permute.xlu0 %496
        %s499 = scalar_lea.vmem %s358, 12 [#allocation9]
        %500 = vst.msk [vmem:[%s499] sm:$0xf] %vm448, %v497
        %501 = vrot.lane.b32.xlu0 %v450, 40
        %v502 = vpop.permute.xlu0 %501
        %s504 = scalar_lea.vmem %s365, 12 [#allocation11]
        %505 = vst.msk [vmem:[%s504] sm:$0xf] %vm448, %v502
        %s506 = sand.u32 %s163, 1
        %s507 = scalar_lea.sflag [#allocation4], %s506
        %s508 = sand.u32 %s163, 1
        %s509 = smul.addr %s508, 16
        %s510 = scalar_lea.vmem [#allocation8], %s509
        %s511 = sand.u32 %s29, 1
        %s512 = scalar_lea.sflag [#allocation10], %s511
        %s513 = sand.u32 %s191, 1
        %s514 = smul.addr %s513, 16
        %s515 = scalar_lea.vmem [#allocation9], %s514
        %s516 = sand.u32 %s29, 1
        %s517 = scalar_lea.sflag [#allocation10], %s516
        %s518 = sand.u32 %s219, 1
        %s519 = smul.addr %s518, 16
        %s520 = scalar_lea.vmem [#allocation11], %s519
        // Predicated region
        $region53: #{tpu_custom_call.1} parent=39 // pred_check
          %p521 = pneg %p173
        $region54: #{tpu_custom_call.1} parent=39 // pred_check_branch
          %523 = sbr.rel (%p521) target = $region56
        $region55: #{tpu_custom_call.1} parent=39 // pred_region
          %525 = vsyncadd %s507, 0
          %s526 = smul.addr %s33, 4
          %s527 = sadd.s32 %s34, %s526
          %s528 = smul.addr %s527, 4
          %s529 = scalar_lea.hbm %s5, %s528
          %s530 = sshll.u32 %s510, 4
          %s531 = int_to_ptr.vmem [resolvable:$true] %s530
          %s532 = sshll.u32 %s529, 4
          %s533 = int_to_ptr.hbm [resolvable:$true] %s532
          %538 = dma.vmem_to_hbm [thread:$0]  %s531, 256, %s533, %s507, 64, 64, 4
        $region56: #{tpu_custom_call.1} parent=39 // pred_fallthru
          _
        // Predicated region
        $region57: #{tpu_custom_call.1} parent=39 // pred_check
          %p539 = pneg %p201
        $region58: #{tpu_custom_call.1} parent=39 // pred_check_branch
          %541 = sbr.rel (%p539) target = $region60
        $region59: #{tpu_custom_call.1} parent=39 // pred_region
          %543 = vsyncadd %s512, 0
          %s544 = smul.addr %s33, 4
          %s545 = sadd.s32 %s34, %s544
          %s546 = smul.addr %s545, 4
          %s547 = scalar_lea.hbm %s6, %s546
          %s548 = sshll.u32 %s515, 4
          %s549 = int_to_ptr.vmem [resolvable:$true] %s548
          %s550 = sshll.u32 %s547, 4
          %s551 = int_to_ptr.hbm [resolvable:$true] %s550
          %556 = dma.vmem_to_hbm [thread:$0]  %s549, 256, %s551, %s512, 64, 64, 4
        $region60: #{tpu_custom_call.1} parent=39 // pred_fallthru
          _
        // Predicated region
        $region61: #{tpu_custom_call.1} parent=39 // pred_check
          %p557 = pneg %p229
        $region62: #{tpu_custom_call.1} parent=39 // pred_check_branch
          %559 = sbr.rel (%p557) target = $region64
        $region63: #{tpu_custom_call.1} parent=39 // pred_region
          %561 = vsyncadd %s517, 0
          %s562 = smul.addr %s33, 4
          %s563 = sadd.s32 %s34, %s562
          %s564 = smul.addr %s563, 4
          %s565 = scalar_lea.hbm %s7, %s564
          %s566 = sshll.u32 %s520, 4
          %s567 = int_to_ptr.vmem [resolvable:$true] %s566
          %s568 = sshll.u32 %s565, 4
          %s569 = int_to_ptr.hbm [resolvable:$true] %s568
          %574 = dma.vmem_to_hbm [thread:$0]  %s567, 256, %s569, %s517, 64, 64, 4
        $region64: #{tpu_custom_call.1} parent=39 // pred_fallthru
          _
      $region40: #{tpu_custom_call.1} parent=5 // pred_fallthru
        _
      %p575 = scmp.le.s32.totalorder 2, %s24
      // Predicated region
      $region65: #{tpu_custom_call.1} parent=5 // pred_check
        %p576 = pneg %p575
      $region66: #{tpu_custom_call.1} parent=5 // pred_check_branch
        %578 = sbr.rel (%p576) target = $region68
      $region67: #{tpu_custom_call.1} parent=5 // pred_region
        %s579 = ssub.s32 %s24, 2
        // Predicated region
        $region69: #{tpu_custom_call.1} parent=67 // pred_check
          %p580 = pneg %p179
        $region70: #{tpu_custom_call.1} parent=67 // pred_check_branch
          %582 = sbr.rel (%p580) target = $region72
        $region71: #{tpu_custom_call.1} parent=67 // pred_region
          %s583 = sand.u32 %s164, 1
          %s584 = scalar_lea.sflag [#allocation4], %s583
          %s585 = sand.u32 %s164, 1
          %s586 = smul.addr %s585, 16
          %s587 = scalar_lea.vmem [#allocation8], %s586
          %589 = dma.done %s584, 256
        $region72: #{tpu_custom_call.1} parent=67 // pred_fallthru
          _
        // Predicated region
        $region73: #{tpu_custom_call.1} parent=67 // pred_check
          %p590 = pneg %p207
        $region74: #{tpu_custom_call.1} parent=67 // pred_check_branch
          %592 = sbr.rel (%p590) target = $region76
        $region75: #{tpu_custom_call.1} parent=67 // pred_region
          %s593 = sand.u32 %s30, 1
          %s594 = scalar_lea.sflag [#allocation10], %s593
          %s595 = sand.u32 %s192, 1
          %s596 = smul.addr %s595, 16
          %s597 = scalar_lea.vmem [#allocation9], %s596
          %599 = dma.done %s594, 256
        $region76: #{tpu_custom_call.1} parent=67 // pred_fallthru
          _
        // Predicated region
        $region77: #{tpu_custom_call.1} parent=67 // pred_check
          %p600 = pneg %p235
        $region78: #{tpu_custom_call.1} parent=67 // pred_check_branch
          %602 = sbr.rel (%p600) target = $region80
        $region79: #{tpu_custom_call.1} parent=67 // pred_region
          %s603 = sand.u32 %s30, 1
          %s604 = scalar_lea.sflag [#allocation10], %s603
          %s605 = sand.u32 %s220, 1
          %s606 = smul.addr %s605, 16
          %s607 = scalar_lea.vmem [#allocation11], %s606
          %609 = dma.done %s604, 256
        $region80: #{tpu_custom_call.1} parent=67 // pred_fallthru
          _
      $region68: #{tpu_custom_call.1} parent=5 // pred_fallthru
        _
    $region6: #{tpu_custom_call.1} parent=1 // loop_footer
      %s28 = sadd.s32 1, %s24
    $region7: #{tpu_custom_call.1} parent=1 // loop_footer_branch
      %23 = sbr.rel target = $region3
    $region8: #{tpu_custom_call.1} parent=1 // loop_exit
      _
    %610 = vsyncpa [#allocation3], 1
    %s611 = scalar_lea.sflag [#allocation3], 1
    %612 = vsyncpa %s611, 1
    %613 = vsyncpa [#allocation6], 1
    %614 = vsyncpa [#allocation4], 1
    %s615 = scalar_lea.sflag [#allocation4], 1
    %616 = vsyncpa %s615, 1
    %617 = vsyncpa [#allocation10], 1
    %s618 = scalar_lea.sflag [#allocation10], 1
    %619 = vsyncpa %s618, 1

</llo_original>
